<compile_context>
chip_gen: v7x
topology: tpu7x:2x2x1
jax: 0.10.0
libtpu: 0.0.40
codegen_flags: <defaults>
</compile_context>

<pallas_src>
import jax
import jax.numpy as jnp
from jax.experimental import pallas as pl
from jax.experimental.pallas import tpu as pltpu


def _se_modulate_kernel(pooled_ref, w1t_ref, w2t_ref, fb_ref, out_ref):
    # pooled_ref : (1, 1, K)        f32, K = C_in*16, avg-pooled feat_small (this batch)
    # w1t_ref    : (K, C_out)       f32, Conv4x4 weight flattened + transposed (resident)
    # w2t_ref    : (C_out, C_out)   f32, Conv1x1 weight transposed (resident)
    # fb_ref/out_ref : (1, C_out, S_TILE)  feat_big tile, lane-dense
    #
    # Gate path: a couple of 1-row matmuls + sigmoids per grid step; fully
    # hidden under the multi-MiB feat_big DMA, so recomputing it per spatial
    # tile is free and avoids any carried scratch (both grid axes stay parallel).
    p = pooled_ref[0]                                                    # (1, K)
    z1 = jnp.dot(p, w1t_ref[...], preferred_element_type=jnp.float32)    # (1, C_out)
    z1 = z1 * jax.nn.sigmoid(z1)                                         # Swish
    z2 = jnp.dot(z1, w2t_ref[...], preferred_element_type=jnp.float32)   # (1, C_out)
    gate = jax.nn.sigmoid(z2).astype(fb_ref.dtype)                       # cast once (tiny)
    # Multiply in the stream dtype; broadcast (1, C_out, 1) over lanes.
    out_ref[...] = fb_ref[...] * gate[:, :, None]


def _spatial_tile(s, c_out, itemsize, n, max_block_bytes=4 << 20):
    """Pick the spatial (lane) tile for the streaming multiply.

    ~4 MiB blocks -> ~16 MiB double-buffered in+out working set: fits v6e/v7x
    scoped VMEM and (with vmem_limit_bytes raised explicitly) v5e as well,
    while keeping the number of ~0.35us grid steps low."""
    bytes_per_lane = max(1, c_out * itemsize)
    budget_lanes = max(128, (max_block_bytes // bytes_per_lane) // 128 * 128)
    if s <= budget_lanes:
        # Whole spatial extent fits in one step per batch.  Only for a
        # single-batch input do we split once (when cleanly possible) so the
        # grid still has >=2 steps: DMA/compute overlap + even megacore split.
        if n == 1 and s > 128 and s % 256 == 0:
            return s // 2
        return s
    if s % 128 == 0:
        divisors = [d for d in range(128, budget_lanes + 1, 128) if s % d == 0]
        return max(divisors) if divisors else 128
    # Ragged spatial extent: cap the tile at the VMEM budget; the cdiv grid's
    # last (masked) block covers the tail instead of one huge full-extent block.
    return budget_lanes


def se_block(feat_small, feat_big, w1, w2):
    """feat_small: (N, C_in, Hs, Ws); feat_big: (N, C_out, Hb, Wb)
    w1: (C_out, C_in, 4, 4) conv weight; w2: (C_out, C_out, 1, 1) conv weight.
    Weights are assumed already spectral-normalized."""
    n, c_in, hs, ws = feat_small.shape
    _, c_out, hb, wb = feat_big.shape
    assert hs % 4 == 0 and ws % 4 == 0
    # TODO(synk): general AdaptiveAvgPool2d bin edges for non-divisible Hs/Ws.
    bh, bw = hs // 4, ws // 4
    k = c_in * 16

    # Adaptive avg-pool to 4x4 as a single XLA reduce (f32 accumulation); the
    # result is N*K floats, shaped (N, 1, K) so the kernel block is (1, 1, K).
    pooled = (feat_small.astype(jnp.float32)
              .reshape(n, c_in, 4, bh, 4, bw)
              .mean(axis=(3, 5))
              .reshape(n, 1, k))
    w1t = w1.reshape(c_out, k).T.astype(jnp.float32)        # (K, C_out)
    w2t = w2.reshape(c_out, c_out).T.astype(jnp.float32)    # (C_out, C_out)

    # Hot, HBM-bound path: lane-dense (N, C_out, Hb*Wb) broadcast multiply.
    s = hb * wb
    fb_flat = feat_big.reshape(n, c_out, s)
    itemsize = feat_big.dtype.itemsize
    s_tile = _spatial_tile(s, c_out, itemsize, n)
    steps = pl.cdiv(s, s_tile)

    # Explicit scoped-VMEM budget: double-buffered in+out blocks plus margin
    # for the tiny resident gate inputs / internal scratch.  Stays well under
    # v7x's 32 MiB scoped / 64 MiB physical VMEM.
    block_bytes = c_out * s_tile * itemsize
    vmem_limit = int(min(max(4 * block_bytes + (2 << 20), 8 << 20), 40 << 20))

    out_flat = pl.pallas_call(
        _se_modulate_kernel,
        out_shape=jax.ShapeDtypeStruct((n, c_out, s), feat_big.dtype),
        grid=(n, steps),
        in_specs=[
            pl.BlockSpec((1, 1, k), lambda b, j: (b, 0, 0)),          # pooled (per batch)
            pl.BlockSpec((k, c_out), lambda b, j: (0, 0)),            # w1t (resident)
            pl.BlockSpec((c_out, c_out), lambda b, j: (0, 0)),        # w2t (resident)
            pl.BlockSpec((1, c_out, s_tile), lambda b, j: (b, 0, j)),  # feat_big tile
        ],
        out_specs=pl.BlockSpec((1, c_out, s_tile), lambda b, j: (b, 0, j)),
        compiler_params=pltpu.CompilerParams(
            dimension_semantics=("parallel", "parallel"),
            vmem_limit_bytes=vmem_limit,
        ),
    )(pooled, w1t, w2t, fb_flat)

    return out_flat.reshape(n, c_out, hb, wb)


def _spectral_normalize(w):
    """Divide conv weight by its largest singular value (converged value of
    PyTorch's spectral_norm power iteration) over the (out, -1) matricization."""
    w_mat = w.reshape(w.shape[0], -1)
    sigma = jnp.linalg.svd(w_mat, compute_uv=False)[0]
    return w / sigma


def _reference(feat_small, feat_big, w1, w2):
    n, c_in, hs, ws = feat_small.shape
    c_out = feat_big.shape[1]
    bh, bw = hs // 4, ws // 4
    pooled = feat_small.reshape(n, c_in, 4, bh, 4, bw).mean(axis=(3, 5))  # (N,C_in,4,4)
    z1 = jnp.einsum("ncij,ocij->no", pooled, w1)
    sw = z1 * jax.nn.sigmoid(z1)
    z2 = jnp.einsum("nc,oc->no", sw, w2.reshape(c_out, c_out))
    gate = jax.nn.sigmoid(z2)
    return feat_big * gate[:, :, None, None]


if __name__ == "__main__":
    key = jax.random.PRNGKey(0)
    k1, k2, k3, k4 = jax.random.split(key, 4)

    N, C_IN, C_OUT = 2, 4, 8
    HS = WS = 16
    HB = WB = 32

    feat_small = jax.random.normal(k1, (N, C_IN, HS, WS), dtype=jnp.float32)
    feat_big = jax.random.normal(k2, (N, C_OUT, HB, WB), dtype=jnp.float32)

    # Deterministic synthetic conv weights (then spectral-normalized).
    w1 = _spectral_normalize(
        jax.random.normal(k3, (C_OUT, C_IN, 4, 4), dtype=jnp.float32) * 0.1)
    w2 = _spectral_normalize(
        jax.random.normal(k4, (C_OUT, C_OUT, 1, 1), dtype=jnp.float32) * 0.1)

    out = se_block(feat_small, feat_big, w1, w2)
    out = jax.block_until_ready(out)

    ref = _reference(feat_small, feat_big, w1, w2)
    assert out.shape == ref.shape
    assert jnp.allclose(out, ref, atol=1e-4, rtol=1e-4), (
        float(jnp.max(jnp.abs(out - ref))))

    print("KERNEL_OK")
</pallas_src>

<mosaic_0001>
module attributes {stable_mosaic.version = 11 : i64} {
  func.func @_se_modulate_kernel(%arg0: i32, %arg1: i32, %arg2: memref<1x1x64xf32, #tpu.memory_space<vmem>>, %arg3: memref<64x8xf32, #tpu.memory_space<vmem>>, %arg4: memref<8x8xf32, #tpu.memory_space<vmem>>, %arg5: memref<1x8x1024xf32, #tpu.memory_space<vmem>>, %arg6: memref<1x8x1024xf32, #tpu.memory_space<vmem>>) attributes {dimension_semantics = [#tpu.dimension_semantics<parallel>, #tpu.dimension_semantics<parallel>], iteration_bounds = array<i64: 2, 1>, scalar_prefetch = 0 : i64, scratch_operands = 0 : i64, tpu.core_type = #tpu.core_type<tc>, window_params = [{transform_indices = @transform_0, window_bounds = array<i64: 1, 1, 64>}, {pipeline_mode = #tpu.pipeline_mode<synchronous>, transform_indices = @transform_1, window_bounds = array<i64: 64, 8>}, {pipeline_mode = #tpu.pipeline_mode<synchronous>, transform_indices = @transform_2, window_bounds = array<i64: 8, 8>}, {transform_indices = @transform_3, window_bounds = array<i64: 1, 8, 1024>}, {transform_indices = @transform_4, window_bounds = array<i64: 1, 8, 1024>}]} {
    %c0 = arith.constant 0 : index
    %c0_0 = arith.constant 0 : index
    %c0_1 = arith.constant 0 : index
    %0 = vector.load %arg2[%c0, %c0_0, %c0_1] : memref<1x1x64xf32, #tpu.memory_space<vmem>>, vector<1x1x64xf32>
    %1 = vector.shape_cast %0 : vector<1x1x64xf32> to vector<1x64xf32>
    %c0_2 = arith.constant 0 : index
    %c0_3 = arith.constant 0 : index
    %2 = vector.load %arg3[%c0_2, %c0_3] : memref<64x8xf32, #tpu.memory_space<vmem>>, vector<64x8xf32>
    %cst = arith.constant dense<0.000000e+00> : vector<1x8xf32>
    %3 = tpu.matmul %1, %2, %cst {dimension_numbers = #tpu.dot_dimension_numbers<[1], [0], [0], [1], [0, 0, 1, 1], [], []>} : vector<1x64xf32>, vector<64x8xf32>, vector<1x8xf32> -> vector<1x8xf32>
    %4 = arith.negf %3 : vector<1x8xf32>
    %5 = math.exp %4 : vector<1x8xf32>
    %cst_4 = arith.constant 1.000000e+00 : f32
    %6 = vector.broadcast %cst_4 : f32 to vector<1x8xf32>
    %7 = arith.addf %6, %5 : vector<1x8xf32>
    %8 = arith.divf %6, %7 : vector<1x8xf32>
    %9 = arith.mulf %3, %8 : vector<1x8xf32>
    %c0_5 = arith.constant 0 : index
    %c0_6 = arith.constant 0 : index
    %10 = vector.load %arg4[%c0_5, %c0_6] : memref<8x8xf32, #tpu.memory_space<vmem>>, vector<8x8xf32>
    %cst_7 = arith.constant dense<0.000000e+00> : vector<1x8xf32>
    %11 = tpu.matmul %9, %10, %cst_7 {dimension_numbers = #tpu.dot_dimension_numbers<[1], [0], [0], [1], [0, 0, 1, 1], [], []>} : vector<1x8xf32>, vector<8x8xf32>, vector<1x8xf32> -> vector<1x8xf32>
    %12 = arith.negf %11 : vector<1x8xf32>
    %13 = math.exp %12 : vector<1x8xf32>
    %cst_8 = arith.constant 1.000000e+00 : f32
    %14 = vector.broadcast %cst_8 : f32 to vector<1x8xf32>
    %15 = arith.addf %14, %13 : vector<1x8xf32>
    %16 = arith.divf %14, %15 : vector<1x8xf32>
    %c0_9 = arith.constant 0 : index
    %c0_10 = arith.constant 0 : index
    %c0_11 = arith.constant 0 : index
    %17 = vector.load %arg5[%c0_9, %c0_10, %c0_11] : memref<1x8x1024xf32, #tpu.memory_space<vmem>>, vector<1x8x1024xf32>
    %18 = vector.shape_cast %16 : vector<1x8xf32> to vector<1x8x1xf32>
    %19 = vector.broadcast %18 : vector<1x8x1xf32> to vector<1x8x1024xf32>
    %20 = arith.mulf %17, %19 : vector<1x8x1024xf32>
    %c0_12 = arith.constant 0 : index
    %c0_13 = arith.constant 0 : index
    %c0_14 = arith.constant 0 : index
    %21 = vector.load %arg6[%c0_12, %c0_13, %c0_14] : memref<1x8x1024xf32, #tpu.memory_space<vmem>>, vector<1x8x1024xf32>
    tpu.vector_store %arg6[%c0_12, %c0_13, %c0_14], %20 {strides = array<i32>} : memref<1x8x1024xf32, #tpu.memory_space<vmem>>, vector<1x8x1024xf32>,
    return
  }
  func.func @transform_0(%arg0: i32, %arg1: i32) -> (i32, i32, i32) {
    %c0_i32 = arith.constant 0 : i32
    %c0_i32_0 = arith.constant 0 : i32
    %c0_i32_1 = arith.constant 0 : i32
    return %arg0, %c0_i32, %c0_i32_0 : i32, i32, i32
  }
  func.func @transform_1(%arg0: i32, %arg1: i32) -> (i32, i32) {
    %c0_i32 = arith.constant 0 : i32
    %c0_i32_0 = arith.constant 0 : i32
    %c0_i32_1 = arith.constant 0 : i32
    return %c0_i32, %c0_i32_0 : i32, i32
  }
  func.func @transform_2(%arg0: i32, %arg1: i32) -> (i32, i32) {
    %c0_i32 = arith.constant 0 : i32
    %c0_i32_0 = arith.constant 0 : i32
    %c0_i32_1 = arith.constant 0 : i32
    return %c0_i32, %c0_i32_0 : i32, i32
  }
  func.func @transform_3(%arg0: i32, %arg1: i32) -> (i32, i32, i32) {
    %c0_i32 = arith.constant 0 : i32
    %c0_i32_0 = arith.constant 0 : i32
    return %arg0, %c0_i32, %arg1 : i32, i32, i32
  }
  func.func @transform_4(%arg0: i32, %arg1: i32) -> (i32, i32, i32) {
    %c0_i32 = arith.constant 0 : i32
    %c0_i32_0 = arith.constant 0 : i32
    return %arg0, %c0_i32, %arg1 : i32, i32, i32
  }
}

</mosaic_0001>

<llo_original>
// kernel: tpu_custom_call.1
$region0: #{tpu_custom_call.1}
  #allocation0 [shape = 'u32[]', space=smem, size = 0x4, offset = 0x4, fixed_abs, tag = 'smem constant byte address 0x4 - core index']
  #allocation1 [shape = 'u32[144,128]{1,0:T(1,128)}', space=vmem, size = 0x12000, scoped, tag = 'internal scratch']
  %s0 = inlined_call_operand.vmem [shape: f32[2,1,64], index: 0, kind: input, shape index: {}]
  %s1 = inlined_call_operand.vmem [shape: f32[64,8], index: 1, kind: input, shape index: {}]
  %s2 = inlined_call_operand.vmem [shape: f32[8,8], index: 2, kind: input, shape index: {}]
  %s3 = inlined_call_operand.hbm [shape: f32[2,8,1024], index: 3, kind: input, shape index: {}]
  %s4 = inlined_call_operand.hbm [shape: f32[2,8,1024], index: 4, kind: output, shape index: {}]
  %s5 = sld [smem:[#allocation0]]
  $region53: #{tpu_custom_call.1} parent=0
    _
  %s7 = ssub.s32 1, %s5
  %s8 = scalar_select 0, %s7, %s5
  $region1: #{tpu_custom_call.1} parent=0
    #allocation2 [shape = 'u8[65536]{0}', space=vmem, size = 0x10000, scoped, tag = 'input window, operand 3']
    #allocation3 [shape = 's32[2]{0}', space=sflag, size = 0x8, scoped, tag = 'scoped memory for tpu_custom_call.1']
    #allocation4 [shape = 's32[2]{0}', space=sflag, size = 0x8, scoped, tag = 'scoped memory for tpu_custom_call.1']
    #allocation5 [shape = 'u8[65536]{0}', space=vmem, size = 0x10000, scoped, tag = 'output window, operand 0']
    %9 = vsyncpa [#allocation3], 0
    %s10 = scalar_lea.sflag [#allocation3], 1
    %11 = vsyncpa %s10, 0
    %12 = vsyncpa [#allocation4], 0
    %s13 = scalar_lea.sflag [#allocation4], 1
    %14 = vsyncpa %s13, 0
    loop: start=0, step=1, limit=4
    $region2: #{tpu_custom_call.1} parent=1 // loop_pre_header
      _
    $region3: #{tpu_custom_call.1} parent=1 // loop_header
      %s16 = sphi 0, %s20
      %p17 = scmp.ge.s32.totalorder %s16, 4
      %s23 = sphi 0, %s35
      %s24 = sphi 0, %s31
      %s25 = sphi 0, %s23
      %s26 = sphi 0, %s24
      %s27 = sphi 0, %s25
      %s28 = sphi 0, %s26
      %s38 = sphi 0, %s40
      %s41 = sphi 0, %s38
      %s42 = sphi 0, %s41
      %s58 = sphi 0, %s42
      %s62 = sphi 0, %s62
      %s64 = sphi 0, %s62
      %s65 = sphi 0, %s64
      %s79 = sphi 0, %s65
      %s83 = sphi 0, %s83
      %s85 = sphi 0, %s83
      %s86 = sphi 0, %s85
      %s100 = sphi 0, %s86
      %s108 = sphi 0, %s110
      %s111 = sphi 0, %s108
      %s112 = sphi 0, %s111
      %s128 = sphi 0, %s112
      %s136 = sphi 0, %s138
      %s139 = sphi 0, %s136
      %s140 = sphi 0, %s139
      %s156 = sphi 0, %s140
    $region4: #{tpu_custom_call.1} parent=1 // loop_header_branch
      %19 = sbr.rel (%p17) target = $region8
    $region5: #{tpu_custom_call.1} parent=1 // loop_body
      %s21 = ssub.s32 %s16, 1
      %s22 = ssub.s32 %s16, 2
      %s29 = sadd.s32 1, %s24
      %p30 = scmp.ge.s32.totalorder %s29, 1
      %s31 = scalar_select %p30, 0, %s29
      %s32 = sadd.s32 1, %s23
      %s33 = scalar_select %p30, %s32, %s23
      %p34 = scmp.ge.s32.totalorder %s33, 2
      %s35 = scalar_select %p34, 0, %s33
      %s36 = ssub.s32 %s23, %s35
      %p37 = scmp.eq.s32.totalorder %s36, 0
      %s39 = sadd.s32 %s38, 1
      %s40 = scalar_select %p37, %s38, %s39
      %p43 = pneg %p37
      %p44 = scmp.eq.s32.totalorder %s16, 1
      %p45 = por %p43, %p44
      %p46 = scmp.ne.s32.totalorder %s38, %s41
      %p47 = scmp.eq.s32.totalorder %s16, 0
      %p48 = por %p46, %p47
      %p49 = scmp.ne.s32.totalorder %s38, %s41
      %p50 = scmp.eq.s32.totalorder %s21, 1
      %p51 = por %p49, %p50
      %p52 = scmp.ne.s32.totalorder %s41, %s42
      %p53 = scmp.eq.s32.totalorder %s21, 0
      %p54 = por %p52, %p53
      %p55 = scmp.ne.s32.totalorder %s41, %s42
      %p56 = scmp.eq.s32.totalorder %s22, 1
      %p57 = por %p55, %p56
      %p59 = scmp.ne.s32.totalorder %s42, %s58
      %p60 = scmp.eq.s32.totalorder %s22, 0
      %p61 = por %p59, %p60
      %s63 = sadd.s32 %s62, 1
      %p66 = scmp.eq.s32.totalorder %s16, 1
      %p67 = scmp.ne.s32.totalorder %s62, %s64
      %p68 = scmp.eq.s32.totalorder %s16, 0
      %p69 = por %p67, %p68
      %p70 = scmp.ne.s32.totalorder %s62, %s64
      %p71 = scmp.eq.s32.totalorder %s21, 1
      %p72 = por %p70, %p71
      %p73 = scmp.ne.s32.totalorder %s64, %s65
      %p74 = scmp.eq.s32.totalorder %s21, 0
      %p75 = por %p73, %p74
      %p76 = scmp.ne.s32.totalorder %s64, %s65
      %p77 = scmp.eq.s32.totalorder %s22, 1
      %p78 = por %p76, %p77
      %p80 = scmp.ne.s32.totalorder %s65, %s79
      %p81 = scmp.eq.s32.totalorder %s22, 0
      %p82 = por %p80, %p81
      %s84 = sadd.s32 %s83, 1
      %p87 = scmp.eq.s32.totalorder %s16, 1
      %p88 = scmp.ne.s32.totalorder %s83, %s85
      %p89 = scmp.eq.s32.totalorder %s16, 0
      %p90 = por %p88, %p89
      %p91 = scmp.ne.s32.totalorder %s83, %s85
      %p92 = scmp.eq.s32.totalorder %s21, 1
      %p93 = por %p91, %p92
      %p94 = scmp.ne.s32.totalorder %s85, %s86
      %p95 = scmp.eq.s32.totalorder %s21, 0
      %p96 = por %p94, %p95
      %p97 = scmp.ne.s32.totalorder %s85, %s86
      %p98 = scmp.eq.s32.totalorder %s22, 1
      %p99 = por %p97, %p98
      %p101 = scmp.ne.s32.totalorder %s86, %s100
      %p102 = scmp.eq.s32.totalorder %s22, 0
      %p103 = por %p101, %p102
      %s104 = ssub.s32 %s23, %s35
      %s105 = ssub.s32 %s24, %s31
      %s106 = sor.u32 %s104, %s105
      %p107 = scmp.eq.s32.totalorder %s106, 0
      %s109 = sadd.s32 %s108, 1
      %s110 = scalar_select %p107, %s108, %s109
      %p113 = pneg %p107
      %p114 = scmp.eq.s32.totalorder %s16, 1
      %p115 = por %p113, %p114
      %p116 = scmp.ne.s32.totalorder %s108, %s111
      %p117 = scmp.eq.s32.totalorder %s16, 0
      %p118 = por %p116, %p117
      %p119 = scmp.ne.s32.totalorder %s108, %s111
      %p120 = scmp.eq.s32.totalorder %s21, 1
      %p121 = por %p119, %p120
      %p122 = scmp.ne.s32.totalorder %s111, %s112
      %p123 = scmp.eq.s32.totalorder %s21, 0
      %p124 = por %p122, %p123
      %p125 = scmp.ne.s32.totalorder %s111, %s112
      %p126 = scmp.eq.s32.totalorder %s22, 1
      %p127 = por %p125, %p126
      %p129 = scmp.ne.s32.totalorder %s112, %s128
      %p130 = scmp.eq.s32.totalorder %s22, 0
      %p131 = por %p129, %p130
      %s132 = ssub.s32 %s23, %s35
      %s133 = ssub.s32 %s24, %s31
      %s134 = sor.u32 %s132, %s133
      %p135 = scmp.eq.s32.totalorder %s134, 0
      %s137 = sadd.s32 %s136, 1
      %s138 = scalar_select %p135, %s136, %s137
      %p141 = pneg %p135
      %p142 = scmp.eq.s32.totalorder %s16, 1
      %p143 = por %p141, %p142
      %p144 = scmp.ne.s32.totalorder %s136, %s139
      %p145 = scmp.eq.s32.totalorder %s16, 0
      %p146 = por %p144, %p145
      %p147 = scmp.ne.s32.totalorder %s136, %s139
      %p148 = scmp.eq.s32.totalorder %s21, 1
      %p149 = por %p147, %p148
      %p150 = scmp.ne.s32.totalorder %s139, %s140
      %p151 = scmp.eq.s32.totalorder %s21, 0
      %p152 = por %p150, %p151
      %p153 = scmp.ne.s32.totalorder %s139, %s140
      %p154 = scmp.eq.s32.totalorder %s22, 1
      %p155 = por %p153, %p154
      %p157 = scmp.ne.s32.totalorder %s140, %s156
      %p158 = scmp.eq.s32.totalorder %s22, 0
      %p159 = por %p157, %p158
      %p160 = scmp.le.s32.totalorder 1, %s16
      %p161 = scmp.lt.s32.totalorder %s16, 3
      %p162 = pnand %p160, %p161
      %p163 = pneg %p162
      // Predicated region
      $region9: #{tpu_custom_call.1} parent=5 // pred_check
        _
      $region10: #{tpu_custom_call.1} parent=5 // pred_check_branch
        %165 = sbr.rel (%p162) target = $region12
      $region11: #{tpu_custom_call.1} parent=5 // pred_region
        %s166 = ssub.s32 %s16, 1
        // Predicated region
        $region13: #{tpu_custom_call.1} parent=11 // pred_check
          %p167 = pneg %p75
        $region14: #{tpu_custom_call.1} parent=11 // pred_check_branch
          %169 = sbr.rel (%p167) target = $region16
        $region15: #{tpu_custom_call.1} parent=11 // pred_region
          _
        $region16: #{tpu_custom_call.1} parent=11 // pred_fallthru
          _
        // Predicated region
        $region17: #{tpu_custom_call.1} parent=11 // pred_check
          %p170 = pneg %p96
        $region18: #{tpu_custom_call.1} parent=11 // pred_check_branch
          %172 = sbr.rel (%p170) target = $region20
        $region19: #{tpu_custom_call.1} parent=11 // pred_region
          _
        $region20: #{tpu_custom_call.1} parent=11 // pred_fallthru
          _
      $region12: #{tpu_custom_call.1} parent=5 // pred_fallthru
        _
      %p173 = scmp.lt.s32.totalorder %s16, 2
      // Predicated region
      $region21: #{tpu_custom_call.1} parent=5 // pred_check
        %p174 = pneg %p173
      $region22: #{tpu_custom_call.1} parent=5 // pred_check_branch
        %176 = sbr.rel (%p174) target = $region24
      $region23: #{tpu_custom_call.1} parent=5 // pred_region
        // Predicated region
        $region25: #{tpu_custom_call.1} parent=23 // pred_check
          %p177 = pneg %p48
        $region26: #{tpu_custom_call.1} parent=23 // pred_check_branch
          %179 = sbr.rel (%p177) target = $region28
        $region27: #{tpu_custom_call.1} parent=23 // pred_region
          %p180 = scmp.lt.s32.totalorder %s23, 1
          %s181 = scalar_select %p180, %s23, 1
          %s182 = scalar_lea.vmem %s0, %s181
        $region28: #{tpu_custom_call.1} parent=23 // pred_fallthru
          _
        // Predicated region
        $region29: #{tpu_custom_call.1} parent=23 // pred_check
          %p183 = pneg %p118
        $region30: #{tpu_custom_call.1} parent=23 // pred_check_branch
          %185 = sbr.rel (%p183) target = $region32
        $region31: #{tpu_custom_call.1} parent=23 // pred_region
          %s186 = sand.u32 %s108, 1
          %s187 = scalar_lea.sflag [#allocation3], %s186
          %s188 = sand.u32 %s108, 1
          %s189 = smul.addr %s188, 64
          %s190 = scalar_lea.vmem [#allocation2], %s189
          %s191 = smul.u32 8, %s24
          %s193 = ssub.s32 1024, 1024
          %194 = vsyncadd %s187, %s193
          %s195 = smul.addr %s23, 8
          %s196 = sadd.s32 %s191, %s195
          %s197 = smul.addr %s196, 128
          %s198 = scalar_lea.hbm %s3, %s197
          %s200 = sshll.u32 %s190, 4
          %s201 = int_to_ptr.vmem [resolvable:$true] %s200
          %203 = dma.hbm_to_vmem [thread:$0]  %s198, 1024, %s201, %s187
        $region32: #{tpu_custom_call.1} parent=23 // pred_fallthru
          _
      $region24: #{tpu_custom_call.1} parent=5 // pred_fallthru
        _
      %p204 = scmp.le.s32.totalorder 1, %s16
      %p205 = scmp.lt.s32.totalorder %s16, 3
      %p206 = pnand %p204, %p205
      %p207 = pneg %p206
      // Predicated region
      $region33: #{tpu_custom_call.1} parent=5 // pred_check
        _
      $region34: #{tpu_custom_call.1} parent=5 // pred_check_branch
        %209 = sbr.rel (%p206) target = $region36
      $region35: #{tpu_custom_call.1} parent=5 // pred_region
        %s210 = ssub.s32 %s16, 1
        %s211 = sand.u32 %s111, 1
        %s212 = scalar_lea.sflag [#allocation3], %s211
        %s213 = sand.u32 %s111, 1
        %s214 = smul.addr %s213, 64
        %s215 = scalar_lea.vmem [#allocation2], %s214
        // Predicated region
        $region37: #{tpu_custom_call.1} parent=35 // pred_check
          %p216 = pneg %p124
        $region38: #{tpu_custom_call.1} parent=35 // pred_check_branch
          %218 = sbr.rel (%p216) target = $region40
        $region39: #{tpu_custom_call.1} parent=35 // pred_region
          %219 = dma.done %s212, 1024
        $region40: #{tpu_custom_call.1} parent=35 // pred_fallthru
          _
        %p220 = scmp.lt.s32.totalorder %s25, 1
        %s221 = scalar_select %p220, %s25, 1
        %s222 = scalar_lea.vmem %s0, %s221
        %p223 = pneg %p54
        %p224 = pneg %p51
        %p225 = pneg %p75
        %p226 = pneg %p72
        %p227 = pneg %p96
        %p228 = pneg %p93
        %s229 = sand.u32 %s111, 1
        %s230 = scalar_lea.sflag [#allocation3], %s229
        %s231 = sand.u32 %s111, 1
        %s232 = smul.addr %s231, 64
        %s233 = scalar_lea.vmem [#allocation2], %s232
        %p234 = pneg %p124
        %p235 = pneg %p121
        %p236 = pneg %p152
        %p237 = pneg %p149
        %s238 = sand.u32 %s139, 1
        %s239 = scalar_lea.sflag [#allocation4], %s238
        %s240 = sand.u32 %s139, 1
        %s241 = smul.addr %s240, 64
        %s242 = scalar_lea.vmem [#allocation5], %s241
        %p243 = scmp.lt.s32.totalorder %s25, 1
        %s244 = scalar_select %p243, %s25, 1
        %s245 = scalar_lea.vmem %s0, %s244
        %s246 = smul.u32 8, %s26
        %s247 = smul.u32 8, %s26
        %v248 = vld [vmem:[%s245] sm:$0x1]
        %v249 = vld [vmem:[%s1] sm:$0xff]
        %v250 = vld [vmem:[%s1 + $0x8] sm:$0xff]
        %v251 = vld [vmem:[%s1 + $0x10] sm:$0xff]
        %v252 = vld [vmem:[%s1 + $0x18] sm:$0xff]
        %v253 = vld [vmem:[%s1 + $0x20] sm:$0xff]
        %v254 = vld [vmem:[%s1 + $0x28] sm:$0xff]
        %v255 = vld [vmem:[%s1 + $0x30] sm:$0xff]
        %v256 = vld [vmem:[%s1 + $0x38] sm:$0xff]
        %vm257 = vcmask 523264
        %v259 = vsel %vm257, %v248, 0
        %261 = vmatprep.subr.mxu0 0.0
        %262 = vmatpush1.msra.mxu0 %v249
        %263 = vmatprep.subr.mxu0 0.0
        %264 = vmatpush1.msra.mxu0 %v250
        %265 = vmatprep.subr.mxu0 0.0
        %266 = vmatpush1.msra.mxu0 %v251
        %267 = vmatprep.subr.mxu0 0.0
        %268 = vmatpush1.msra.mxu0 %v252
        %269 = vmatprep.subr.mxu0 0.0
        %270 = vmatpush1.msra.mxu0 %v253
        %271 = vmatprep.subr.mxu0 0.0
        %272 = vmatpush1.msra.mxu0 %v254
        %273 = vmatprep.subr.mxu0 0.0
        %274 = vmatpush1.msra.mxu0 %v255
        %275 = vmatprep.subr.mxu0 0.0
        %276 = vmatpush1.msra.mxu0 %v256
        %277 = vmatprep.subr.mxu0 0.0
        %278 = vmatpush1.msra.mxu0 0.0
        %279 = vmatprep.subr.mxu0 0.0
        %280 = vmatpush1.msra.mxu0 0.0
        %281 = vmatprep.subr.mxu0 0.0
        %282 = vmatpush1.msra.mxu0 0.0
        %283 = vmatprep.subr.mxu0 0.0
        %284 = vmatpush1.msra.mxu0 0.0
        %285 = vmatprep.subr.mxu0 0.0
        %286 = vmatpush1.msra.mxu0 0.0
        %287 = vmatprep.subr.mxu0 0.0
        %288 = vmatpush1.msra.mxu0 0.0
        %289 = vmatprep.subr.mxu0 0.0
        %290 = vmatpush1.msra.mxu0 0.0
        %291 = vmatprep.subr.mxu0 0.0
        %292 = vmatpush1.msra.mxu0 0.0
        %293 = vmatprep.subr.mxu0 0.0
        %294 = vmatpush1.msra.mxu0 0.0
        %295 = vmatprep.subr.mxu0 0.0
        %296 = vmatpush1.msra.mxu0 0.0
        %297 = vmatprep.subr.mxu0 0.0
        %298 = vmatpush1.msra.mxu0 0.0
        %299 = vmatprep.subr.mxu0 0.0
        %300 = vmatpush1.msra.mxu0 0.0
        %301 = vmatprep.subr.mxu0 0.0
        %302 = vmatpush1.msra.mxu0 0.0
        %303 = vmatprep.subr.mxu0 0.0
        %304 = vmatpush1.msra.mxu0 0.0
        %305 = vmatprep.subr.mxu0 0.0
        %306 = vmatpush1.msra.mxu0 0.0
        %307 = vmatprep.subr.mxu0 0.0
        %308 = vmatpush1.msra.mxu0 0.0
        %309 = vmatprep.subr.mxu0 0.0
        %310 = vmatpush1.msra.mxu0 0.0
        %311 = vmatprep.subr.mxu0 0.0
        %312 = vmatpush1.msra.mxu0 0.0
        %313 = vmatprep.subr.mxu0 0.0
        %314 = vmatpush1.msra.mxu0 0.0
        %315 = vmatprep.subr.mxu0 0.0
        %316 = vmatpush1.msra.mxu0 0.0
        %317 = vmatprep.subr.mxu0 0.0
        %318 = vmatpush1.msra.mxu0 0.0
        %319 = vmatprep.subr.mxu0 0.0
        %320 = vmatpush1.msra.mxu0 0.0
        %321 = vmatprep.subr.mxu0 0.0
        %322 = vmatpush1.msra.mxu0 0.0
        %323 = vmatprep.subr.mxu0 0.0
        %324 = vmatpush1.msra.mxu0 0.0
        %325 = vmatprep.mubr.f32.mxu0 0.0
        %326 = vmatmul.mubr.f32.gmra.mrb[0].mxu0 %v259
        %v327 = vpop.f32.mrb[0].mxu0
        %v328 = vadd.f32 0.0, %v327
        %v329 = vpop.f32.mrb[0].mxu0
        %330 = vdwg.mxu0
        %v331 = vxor.u32 %v328, 2147483648
        %v332 = vmul.f32 %v331, 1.442695
        %v333 = vpow.pop %v332
        %v334 = vadd.f32 %v333, 1.0
        %v335 = vrcp.pop %v334
        %v336 = vmul.f32 1.0, %v335
        %v337 = vmul.f32 %v328, %v336
        %v338 = vld [vmem:[%s2] sm:$0xff]
        %vm339 = vcmask 64512
        %v341 = vsel %vm339, %v337, 0
        %343 = vmatprep.subr.mxu0 0.0
        %344 = vmatpush1.msra.mxu0 %v338
        %345 = vmatprep.subr.mxu0 0.0
        %346 = vmatpush1.msra.mxu0 0.0
        %347 = vmatprep.subr.mxu0 0.0
        %348 = vmatpush1.msra.mxu0 0.0
        %349 = vmatprep.subr.mxu0 0.0
        %350 = vmatpush1.msra.mxu0 0.0
        %351 = vmatprep.subr.mxu0 0.0
        %352 = vmatpush1.msra.mxu0 0.0
        %353 = vmatprep.subr.mxu0 0.0
        %354 = vmatpush1.msra.mxu0 0.0
        %355 = vmatprep.subr.mxu0 0.0
        %356 = vmatpush1.msra.mxu0 0.0
        %357 = vmatprep.subr.mxu0 0.0
        %358 = vmatpush1.msra.mxu0 0.0
        %359 = vmatprep.subr.mxu0 0.0
        %360 = vmatpush1.msra.mxu0 0.0
        %361 = vmatprep.subr.mxu0 0.0
        %362 = vmatpush1.msra.mxu0 0.0
        %363 = vmatprep.subr.mxu0 0.0
        %364 = vmatpush1.msra.mxu0 0.0
        %365 = vmatprep.subr.mxu0 0.0
        %366 = vmatpush1.msra.mxu0 0.0
        %367 = vmatprep.subr.mxu0 0.0
        %368 = vmatpush1.msra.mxu0 0.0
        %369 = vmatprep.subr.mxu0 0.0
        %370 = vmatpush1.msra.mxu0 0.0
        %371 = vmatprep.subr.mxu0 0.0
        %372 = vmatpush1.msra.mxu0 0.0
        %373 = vmatprep.subr.mxu0 0.0
        %374 = vmatpush1.msra.mxu0 0.0
        %375 = vmatprep.subr.mxu0 0.0
        %376 = vmatpush1.msra.mxu0 0.0
        %377 = vmatprep.subr.mxu0 0.0
        %378 = vmatpush1.msra.mxu0 0.0
        %379 = vmatprep.subr.mxu0 0.0
        %380 = vmatpush1.msra.mxu0 0.0
        %381 = vmatprep.subr.mxu0 0.0
        %382 = vmatpush1.msra.mxu0 0.0
        %383 = vmatprep.subr.mxu0 0.0
        %384 = vmatpush1.msra.mxu0 0.0
        %385 = vmatprep.subr.mxu0 0.0
        %386 = vmatpush1.msra.mxu0 0.0
        %387 = vmatprep.subr.mxu0 0.0
        %388 = vmatpush1.msra.mxu0 0.0
        %389 = vmatprep.subr.mxu0 0.0
        %390 = vmatpush1.msra.mxu0 0.0
        %391 = vmatprep.subr.mxu0 0.0
        %392 = vmatpush1.msra.mxu0 0.0
        %393 = vmatprep.subr.mxu0 0.0
        %394 = vmatpush1.msra.mxu0 0.0
        %395 = vmatprep.subr.mxu0 0.0
        %396 = vmatpush1.msra.mxu0 0.0
        %397 = vmatprep.subr.mxu0 0.0
        %398 = vmatpush1.msra.mxu0 0.0
        %399 = vmatprep.subr.mxu0 0.0
        %400 = vmatpush1.msra.mxu0 0.0
        %401 = vmatprep.subr.mxu0 0.0
        %402 = vmatpush1.msra.mxu0 0.0
        %403 = vmatprep.subr.mxu0 0.0
        %404 = vmatpush1.msra.mxu0 0.0
        %405 = vmatprep.subr.mxu0 0.0
        %406 = vmatpush1.msra.mxu0 0.0
        %407 = vmatprep.mubr.f32.mxu0 0.0
        %408 = vmatmul.mubr.f32.gmra.mrb[0].mxu0 %v341
        %v409 = vpop.f32.mrb[0].mxu0
        %v410 = vadd.f32 0.0, %v409
        %v411 = vpop.f32.mrb[0].mxu0
        %412 = vdwg.mxu0
        %v413 = vxor.u32 %v410, 2147483648
        %v414 = vmul.f32 %v413, 1.442695
        %v415 = vpow.pop %v414
        %v416 = vadd.f32 %v415, 1.0
        %v417 = vrcp.pop %v416
        %v418 = vmul.f32 1.0, %v417
        %v419 = vld [vmem:[%s215] sm:$0xff]
        %v420 = vld [vmem:[%s215 + $0x8] sm:$0xff]
        %v421 = vld [vmem:[%s215 + $0x10] sm:$0xff]
        %v422 = vld [vmem:[%s215 + $0x18] sm:$0xff]
        %v423 = vld [vmem:[%s215 + $0x20] sm:$0xff]
        %v424 = vld [vmem:[%s215 + $0x28] sm:$0xff]
        %v425 = vld [vmem:[%s215 + $0x30] sm:$0xff]
        %v426 = vld [vmem:[%s215 + $0x38] sm:$0xff]
        %v427 = vlaneseq
        %v428 = vshrl.u32 %v427, 7
        %v429 = vsub.s32 0, %v428
        %v430 = vrot.slane %v418, %v429
        %432 = vbcast.lane.b32.xlu0 %v430, 256
        %v433 = vpop.permute.xlu0 %432
        %v434 = vmul.f32 %v419, %v433
        %v435 = vmul.f32 %v420, %v433
        %v436 = vmul.f32 %v421, %v433
        %v437 = vmul.f32 %v422, %v433
        %v438 = vmul.f32 %v423, %v433
        %v439 = vmul.f32 %v424, %v433
        %v440 = vmul.f32 %v425, %v433
        %v441 = vmul.f32 %v426, %v433
        %442 = vst [vmem:[%s242] sm:$0xff] %v434
        %443 = vst [vmem:[%s242 + $0x8] sm:$0xff] %v435
        %444 = vst [vmem:[%s242 + $0x10] sm:$0xff] %v436
        %445 = vst [vmem:[%s242 + $0x18] sm:$0xff] %v437
        %446 = vst [vmem:[%s242 + $0x20] sm:$0xff] %v438
        %447 = vst [vmem:[%s242 + $0x28] sm:$0xff] %v439
        %448 = vst [vmem:[%s242 + $0x30] sm:$0xff] %v440
        %449 = vst [vmem:[%s242 + $0x38] sm:$0xff] %v441
        %s450 = sand.u32 %s139, 1
        %s451 = scalar_lea.sflag [#allocation4], %s450
        %s452 = sand.u32 %s139, 1
        %s453 = smul.addr %s452, 64
        %s454 = scalar_lea.vmem [#allocation5], %s453
        // Predicated region
        $region41: #{tpu_custom_call.1} parent=35 // pred_check
          %p455 = pneg %p149
        $region42: #{tpu_custom_call.1} parent=35 // pred_check_branch
          %457 = sbr.rel (%p455) target = $region44
        $region43: #{tpu_custom_call.1} parent=35 // pred_region
          %s458 = smul.u32 8, %s26
          %s460 = ssub.s32 1024, 1024
          %461 = vsyncadd %s451, %s460
          %s462 = smul.addr %s25, 8
          %s463 = sadd.s32 %s458, %s462
          %s464 = smul.addr %s463, 128
          %s465 = scalar_lea.hbm %s4, %s464
          %s467 = sshll.u32 %s454, 4
          %s468 = int_to_ptr.vmem [resolvable:$true] %s467
          %470 = dma.vmem_to_hbm [thread:$0]  %s468, 1024, %s465, %s451
        $region44: #{tpu_custom_call.1} parent=35 // pred_fallthru
          _
      $region36: #{tpu_custom_call.1} parent=5 // pred_fallthru
        _
      %p471 = scmp.le.s32.totalorder 2, %s16
      // Predicated region
      $region45: #{tpu_custom_call.1} parent=5 // pred_check
        %p472 = pneg %p471
      $region46: #{tpu_custom_call.1} parent=5 // pred_check_branch
        %474 = sbr.rel (%p472) target = $region48
      $region47: #{tpu_custom_call.1} parent=5 // pred_region
        %s475 = ssub.s32 %s16, 2
        // Predicated region
        $region49: #{tpu_custom_call.1} parent=47 // pred_check
          %p476 = pneg %p155
        $region50: #{tpu_custom_call.1} parent=47 // pred_check_branch
          %478 = sbr.rel (%p476) target = $region52
        $region51: #{tpu_custom_call.1} parent=47 // pred_region
          %s479 = sand.u32 %s140, 1
          %s480 = scalar_lea.sflag [#allocation4], %s479
          %s481 = sand.u32 %s140, 1
          %s482 = smul.addr %s481, 64
          %s483 = scalar_lea.vmem [#allocation5], %s482
          %484 = dma.done %s480, 1024
        $region52: #{tpu_custom_call.1} parent=47 // pred_fallthru
          _
      $region48: #{tpu_custom_call.1} parent=5 // pred_fallthru
        _
    $region6: #{tpu_custom_call.1} parent=1 // loop_footer
      %s20 = sadd.s32 1, %s16
    $region7: #{tpu_custom_call.1} parent=1 // loop_footer_branch
      %15 = sbr.rel target = $region3
    $region8: #{tpu_custom_call.1} parent=1 // loop_exit
      _
    %485 = vsyncpa [#allocation3], 1
    %s486 = scalar_lea.sflag [#allocation3], 1
    %487 = vsyncpa %s486, 1
    %488 = vsyncpa [#allocation4], 1
    %s489 = scalar_lea.sflag [#allocation4], 1
    %490 = vsyncpa %s489, 1

</llo_original>
